<compile_context>
chip_gen: v7x
topology: tpu7x:2x2x1
jax: 0.10.0
libtpu: 0.0.40
codegen_flags: <defaults>
</compile_context>

<pallas_src>
import functools

import jax
import jax.numpy as jnp
from jax.experimental import pallas as pl
from jax.experimental.pallas import tpu as pltpu


def _round_up(x: int, m: int) -> int:
    return ((x + m - 1) // m) * m


def _mlpd_kernel(x_ref, w1_ref, b1_ref, w2_ref, b2_ref, o_ref):
    x = x_ref[...]
    # Mixed-precision policy: cast the activation tile to the weights' matmul
    # dtype in VMEM (no extra HBM round trip); MXU accumulation stays f32.
    if x.dtype != w1_ref.dtype:
        x = x.astype(w1_ref.dtype)
    # Layer 1: MXU matmul (f32 accumulation), bias + ReLU in f32 on the VPU.
    h = jnp.dot(x, w1_ref[...], preferred_element_type=jnp.float32)
    h = jnp.maximum(h + b1_ref[...], 0.0)
    if w2_ref.dtype != jnp.float32:
        h = h.astype(w2_ref.dtype)
    # Layer 2: MXU matmul (f32 accumulation), bias in f32.
    y = jnp.dot(h, w2_ref[...], preferred_element_type=jnp.float32)
    o_ref[...] = (y + b2_ref[...]).astype(o_ref.dtype)


def prepare_mlpd_params(w1, b1, w2, b2, *, matmul_dtype=None, hidden_multiple=256):
    """One-time packing of the encoder parameters (run OUTSIDE the hot path).

    * Accepts 1-D biases (PyTorch nn.Linear convention) or (1, H)/(1, N).
    * Pads only the hidden dim (to a 256 multiple for the v6e/v7x MXU); the
      zero padding is exact for matmul + bias + ReLU.
    * matmul_dtype=jnp.bfloat16 is the production recommendation on
      v5e/v6e/v7x (bf16 MXU inputs, f32 accumulation).  Note this changes the
      numerics of the matmul inputs vs. a pure-f32 reference.
    """
    if b1.ndim == 1:
        b1 = b1[None, :]
    if b2.ndim == 1:
        b2 = b2[None, :]
    meta_dim, hidden_dim = w1.shape
    mm_dtype = matmul_dtype if matmul_dtype is not None else w1.dtype
    hp = _round_up(hidden_dim, hidden_multiple)

    w1_p = jnp.pad(w1, ((0, 0), (0, hp - hidden_dim))).astype(mm_dtype)
    b1_p = jnp.pad(b1, ((0, 0), (0, hp - hidden_dim))).astype(jnp.float32)
    w2_p = jnp.pad(w2, ((0, hp - hidden_dim), (0, 0))).astype(mm_dtype)
    b2_p = b2.astype(jnp.float32)
    return w1_p, b1_p, w2_p, b2_p


def mlpd_forward(dataset_meta_features, prepared_params, *,
                 block_batch: int = 1024, x_buffer_count=None):
    """MLPD.forward(dataset_meta_features) == encoder(dataset_meta_features).

    `prepared_params` comes from prepare_mlpd_params (weights padded/cast once).
    `x_buffer_count`: optionally deepen x's pipeline (e.g. 3) if the x-tile DMA
    is exposed at small hidden sizes; None keeps the default double buffer.
    """
    w1_p, b1_p, w2_p, b2_p = prepared_params
    x = dataset_meta_features
    batch, meta_dim = x.shape
    kp, hp = w1_p.shape
    assert kp == meta_dim, "prepared W1 does not match meta_dim"
    out_dim = w2_p.shape[1]
    out_dtype = x.dtype
    mm_dtype = w1_p.dtype

    x_bytes = jnp.dtype(x.dtype).itemsize
    mm_bytes = jnp.dtype(mm_dtype).itemsize
    out_bytes = jnp.dtype(out_dtype).itemsize

    # Batch tile: full batch when it fits (full-array-dim exception, no
    # padding/masking needed); otherwise block_batch rounded to the sublane
    # packing of the matmul dtype (8 f32 / 16 bf16 / 32 int8-fp8).
    sub = max(8, 32 // mm_bytes)
    if batch <= block_batch:
        tb = batch
    else:
        tb = _round_up(block_batch, sub)
    grid = (pl.cdiv(batch, tb),)   # last block masked by Pallas if partial

    x_idx = lambda i: (i, 0)
    res_idx = lambda i: (0, 0)
    resident = pl.Buffered(1)      # constant index_map -> single VMEM buffer

    if x_buffer_count is None:
        x_spec = pl.BlockSpec((tb, meta_dim), x_idx)
        n_x_buf = 2
    else:
        x_spec = pl.BlockSpec((tb, meta_dim), x_idx,
                              pipeline_mode=pl.Buffered(x_buffer_count))
        n_x_buf = x_buffer_count

    in_specs = [
        x_spec,                                                               # x: streamed
        pl.BlockSpec((kp, hp), res_idx, pipeline_mode=resident),              # W1 resident
        pl.BlockSpec((1, hp), res_idx, pipeline_mode=resident),               # b1 resident
        pl.BlockSpec((hp, out_dim), res_idx, pipeline_mode=resident),         # W2 resident
        pl.BlockSpec((1, out_dim), res_idx, pipeline_mode=resident),          # b2 resident
    ]

    # VMEM budget (bytes): actual buffer counts, 8-sublane rounding on the
    # (1, ·) bias blocks, the f32 hidden intermediate and the in-kernel cast
    # copy of x.  2x fudge for compiler scratch, capped at 48 MiB to keep
    # headroom under v7x's 64 MiB physical per-TC VMEM.
    needed = (
        n_x_buf * tb * meta_dim * x_bytes
        + 2 * tb * out_dim * out_bytes
        + kp * hp * mm_bytes
        + hp * out_dim * mm_bytes
        + 8 * hp * 4 + 8 * max(out_dim, 128) * 4
        + tb * hp * 4
        + tb * meta_dim * mm_bytes
    )
    vmem_limit = int(min(max(2 * needed, 4 << 20), 48 << 20))

    cost = pl.CostEstimate(
        flops=2 * batch * meta_dim * hp + 2 * batch * hp * out_dim,
        transcendentals=0,
        bytes_accessed=(x.size * x_bytes
                        + w1_p.size * mm_bytes + w2_p.size * mm_bytes
                        + b1_p.size * 4 + b2_p.size * 4
                        + batch * out_dim * out_bytes),
    )

    return pl.pallas_call(
        _mlpd_kernel,
        out_shape=jax.ShapeDtypeStruct((batch, out_dim), out_dtype),
        grid=grid,
        in_specs=in_specs,
        out_specs=pl.BlockSpec((tb, out_dim), lambda i: (i, 0)),
        compiler_params=pltpu.CompilerParams(
            dimension_semantics=("parallel",),   # batch axis shards on v7x's 2 TCs
            vmem_limit_bytes=vmem_limit,
        ),
        cost_estimate=cost,
    )(x, w1_p, b1_p, w2_p, b2_p)


def mlpd_reference(x, w1, b1, w2, b2):
    h = jnp.maximum(x @ w1 + b1, 0.0)
    return h @ w2 + b2


if __name__ == "__main__":
    # Small shapes implied by the forward: a batch of dataset meta-feature
    # vectors fed through a 2-layer MLP encoder.
    batch, meta_dim, hidden_dim, out_dim = 8, 16, 32, 8

    key = jax.random.PRNGKey(0)
    kx, kw1, kb1, kw2, kb2 = jax.random.split(key, 5)

    dataset_meta_features = jax.random.normal(kx, (batch, meta_dim), jnp.float32)
    # Synthetic encoder parameters ([in, out] weights, 1-D biases like nn.Linear).
    w1 = jax.random.normal(kw1, (meta_dim, hidden_dim), jnp.float32) * 0.1
    b1 = jax.random.normal(kb1, (hidden_dim,), jnp.float32) * 0.1
    w2 = jax.random.normal(kw2, (hidden_dim, out_dim), jnp.float32) * 0.1
    b2 = jax.random.normal(kb2, (out_dim,), jnp.float32) * 0.1

    ref = mlpd_reference(dataset_meta_features, w1, b1, w2, b2)
    fwd = jax.jit(functools.partial(mlpd_forward, block_batch=1024))

    # Exact f32 path.
    params_f32 = prepare_mlpd_params(w1, b1, w2, b2)          # one-time pad/cast
    out = jax.block_until_ready(fwd(dataset_meta_features, params_f32))
    assert out.shape == (batch, out_dim), out.shape
    assert jnp.allclose(out, ref, atol=1e-5, rtol=1e-5), "f32 mismatch vs reference"

    # bf16 MXU-input path (production recommendation); f32 accumulation, so
    # only input-quantization error vs the f32 reference -> loose tolerance.
    params_bf16 = prepare_mlpd_params(w1, b1, w2, b2, matmul_dtype=jnp.bfloat16)
    out_bf16 = jax.block_until_ready(fwd(dataset_meta_features, params_bf16))
    assert out_bf16.shape == (batch, out_dim), out_bf16.shape
    assert jnp.allclose(out_bf16, ref, atol=5e-2, rtol=5e-2), "bf16 mismatch vs reference"

    print("KERNEL_OK")
</pallas_src>

<mosaic_0001>
module attributes {stable_mosaic.version = 11 : i64} {
  func.func @_mlpd_kernel(%arg0: i32, %arg1: memref<8x16xf32, #tpu.memory_space<vmem>>, %arg2: memref<16x256xf32, #tpu.memory_space<vmem>>, %arg3: memref<1x256xf32, #tpu.memory_space<vmem>>, %arg4: memref<256x8xf32, #tpu.memory_space<vmem>>, %arg5: memref<1x8xf32, #tpu.memory_space<vmem>>, %arg6: memref<8x8xf32, #tpu.memory_space<vmem>>) attributes {dimension_semantics = [#tpu.dimension_semantics<parallel>], iteration_bounds = array<i64: 1>, scalar_prefetch = 0 : i64, scratch_operands = 0 : i64, tpu.core_type = #tpu.core_type<tc>, window_params = [{transform_indices = @transform_0, window_bounds = array<i64: 8, 16>}, {pipeline_mode = #tpu.pipeline_mode<synchronous>, transform_indices = @transform_1, window_bounds = array<i64: 16, 256>}, {pipeline_mode = #tpu.pipeline_mode<synchronous>, transform_indices = @transform_2, window_bounds = array<i64: 1, 256>}, {pipeline_mode = #tpu.pipeline_mode<synchronous>, transform_indices = @transform_3, window_bounds = array<i64: 256, 8>}, {pipeline_mode = #tpu.pipeline_mode<synchronous>, transform_indices = @transform_4, window_bounds = array<i64: 1, 8>}, {transform_indices = @transform_5, window_bounds = array<i64: 8, 8>}]} {
    %c0 = arith.constant 0 : index
    %c0_0 = arith.constant 0 : index
    %0 = vector.load %arg1[%c0, %c0_0] : memref<8x16xf32, #tpu.memory_space<vmem>>, vector<8x16xf32>
    %c0_1 = arith.constant 0 : index
    %c0_2 = arith.constant 0 : index
    %1 = vector.load %arg2[%c0_1, %c0_2] : memref<16x256xf32, #tpu.memory_space<vmem>>, vector<16x256xf32>
    %cst = arith.constant dense<0.000000e+00> : vector<8x256xf32>
    %2 = tpu.matmul %0, %1, %cst {dimension_numbers = #tpu.dot_dimension_numbers<[1], [0], [0], [1], [0, 0, 1, 1], [], []>} : vector<8x16xf32>, vector<16x256xf32>, vector<8x256xf32> -> vector<8x256xf32>
    %c0_3 = arith.constant 0 : index
    %c0_4 = arith.constant 0 : index
    %3 = vector.load %arg3[%c0_3, %c0_4] : memref<1x256xf32, #tpu.memory_space<vmem>>, vector<1x256xf32>
    %4 = vector.broadcast %3 : vector<1x256xf32> to vector<8x256xf32>
    %5 = arith.addf %2, %4 : vector<8x256xf32>
    %cst_5 = arith.constant 0.000000e+00 : f32
    %6 = vector.broadcast %cst_5 : f32 to vector<8x256xf32>
    %7 = arith.maximumf %5, %6 : vector<8x256xf32>
    %c0_6 = arith.constant 0 : index
    %c0_7 = arith.constant 0 : index
    %8 = vector.load %arg4[%c0_6, %c0_7] : memref<256x8xf32, #tpu.memory_space<vmem>>, vector<256x8xf32>
    %cst_8 = arith.constant dense<0.000000e+00> : vector<8x8xf32>
    %9 = tpu.matmul %7, %8, %cst_8 {dimension_numbers = #tpu.dot_dimension_numbers<[1], [0], [0], [1], [0, 0, 1, 1], [], []>} : vector<8x256xf32>, vector<256x8xf32>, vector<8x8xf32> -> vector<8x8xf32>
    %c0_9 = arith.constant 0 : index
    %c0_10 = arith.constant 0 : index
    %10 = vector.load %arg5[%c0_9, %c0_10] : memref<1x8xf32, #tpu.memory_space<vmem>>, vector<1x8xf32>
    %11 = vector.broadcast %10 : vector<1x8xf32> to vector<8x8xf32>
    %12 = arith.addf %9, %11 : vector<8x8xf32>
    %c0_11 = arith.constant 0 : index
    %c0_12 = arith.constant 0 : index
    %13 = vector.load %arg6[%c0_11, %c0_12] : memref<8x8xf32, #tpu.memory_space<vmem>>, vector<8x8xf32>
    tpu.vector_store %arg6[%c0_11, %c0_12], %12 {strides = array<i32>} : memref<8x8xf32, #tpu.memory_space<vmem>>, vector<8x8xf32>,
    return
  }
  func.func @transform_0(%arg0: i32) -> (i32, i32) {
    %c0_i32 = arith.constant 0 : i32
    %c0_i32_0 = arith.constant 0 : i32
    return %arg0, %c0_i32 : i32, i32
  }
  func.func @transform_1(%arg0: i32) -> (i32, i32) {
    %c0_i32 = arith.constant 0 : i32
    %c0_i32_0 = arith.constant 0 : i32
    %c0_i32_1 = arith.constant 0 : i32
    return %c0_i32, %c0_i32_0 : i32, i32
  }
  func.func @transform_2(%arg0: i32) -> (i32, i32) {
    %c0_i32 = arith.constant 0 : i32
    %c0_i32_0 = arith.constant 0 : i32
    %c0_i32_1 = arith.constant 0 : i32
    return %c0_i32, %c0_i32_0 : i32, i32
  }
  func.func @transform_3(%arg0: i32) -> (i32, i32) {
    %c0_i32 = arith.constant 0 : i32
    %c0_i32_0 = arith.constant 0 : i32
    %c0_i32_1 = arith.constant 0 : i32
    return %c0_i32, %c0_i32_0 : i32, i32
  }
  func.func @transform_4(%arg0: i32) -> (i32, i32) {
    %c0_i32 = arith.constant 0 : i32
    %c0_i32_0 = arith.constant 0 : i32
    %c0_i32_1 = arith.constant 0 : i32
    return %c0_i32, %c0_i32_0 : i32, i32
  }
  func.func @transform_5(%arg0: i32) -> (i32, i32) {
    %c0_i32 = arith.constant 0 : i32
    %c0_i32_0 = arith.constant 0 : i32
    return %arg0, %c0_i32 : i32, i32
  }
}

</mosaic_0001>

<llo_original>
// kernel: mlpd_forward.1
$region0: #{mlpd_forward.1}
  #allocation0 [shape = 'u32[]', space=smem, size = 0x4, offset = 0x4, fixed_abs, tag = 'smem constant byte address 0x4 - core index']
  #allocation1 [shape = 'u32[144,128]{1,0:T(1,128)}', space=vmem, size = 0x12000, scoped, tag = 'internal scratch']
  %s0 = inlined_call_operand.vmem [shape: f32[8,16], index: 0, kind: input, shape index: {}]
  %s1 = inlined_call_operand.vmem [shape: f32[16,256], index: 1, kind: input, shape index: {}]
  %s2 = inlined_call_operand.vmem [shape: f32[1,256], index: 2, kind: input, shape index: {}]
  %s3 = inlined_call_operand.vmem [shape: f32[256,8], index: 3, kind: input, shape index: {}]
  %s4 = inlined_call_operand.vmem [shape: f32[1,8], index: 4, kind: input, shape index: {}]
  %s5 = inlined_call_operand.hbm [shape: f32[8,8], index: 5, kind: output, shape index: {}]
  %s6 = sld [smem:[#allocation0]]
  $region30: #{mlpd_forward.1} parent=0
    _
  %s8 = ssub.s32 1, %s6
  %s9 = scalar_select 0, %s8, %s6
  $region1: #{mlpd_forward.1} parent=0
    #allocation2 [shape = 'u8[4096]{0}', space=vmem, size = 0x1000, scoped, tag = 'output window, operand 0, single buffered']
    #allocation3 [shape = 's32[1]{0}', space=sflag, size = 0x4, scoped, tag = 'scoped memory for mlpd_forward.1']
    %10 = vsyncpa [#allocation3], 0
    // Predicated region
    $region2: #{mlpd_forward.1} parent=1 // pred_check
      _
    $region3: #{mlpd_forward.1} parent=1 // pred_check_branch
      %12 = sbr.rel (0) target = $region5
    $region4: #{mlpd_forward.1} parent=1 // pred_region
      _
    $region5: #{mlpd_forward.1} parent=1 // pred_fallthru
      _
    // Predicated region
    $region6: #{mlpd_forward.1} parent=1 // pred_check
      _
    $region7: #{mlpd_forward.1} parent=1 // pred_check_branch
      %14 = sbr.rel (0) target = $region9
    $region8: #{mlpd_forward.1} parent=1 // pred_region
      _
    $region9: #{mlpd_forward.1} parent=1 // pred_fallthru
      _
    // Predicated region
    $region10: #{mlpd_forward.1} parent=1 // pred_check
      _
    $region11: #{mlpd_forward.1} parent=1 // pred_check_branch
      %16 = sbr.rel (0) target = $region13
    $region12: #{mlpd_forward.1} parent=1 // pred_region
      _
    $region13: #{mlpd_forward.1} parent=1 // pred_fallthru
      _
    // Predicated region
    $region14: #{mlpd_forward.1} parent=1 // pred_check
      _
    $region15: #{mlpd_forward.1} parent=1 // pred_check_branch
      %18 = sbr.rel (0) target = $region17
    $region16: #{mlpd_forward.1} parent=1 // pred_region
      _
    $region17: #{mlpd_forward.1} parent=1 // pred_fallthru
      _
    // Predicated region
    $region18: #{mlpd_forward.1} parent=1 // pred_check
      _
    $region19: #{mlpd_forward.1} parent=1 // pred_check_branch
      %20 = sbr.rel (0) target = $region21
    $region20: #{mlpd_forward.1} parent=1 // pred_region
      _
    $region21: #{mlpd_forward.1} parent=1 // pred_fallthru
      _
    %v21 = vld [vmem:[%s0] sm:$0xff]
    %v22 = vld [vmem:[%s1] sm:$0xff]
    %v23 = vld [vmem:[%s1 + $0x8] sm:$0xff]
    %v24 = vld [vmem:[%s1 + $0x10] sm:$0xff]
    %v25 = vld [vmem:[%s1 + $0x18] sm:$0xff]
    %v26 = vld [vmem:[%s2] sm:$0x3]
    %v28 = vlaneseq
    %v29 = vshrl.u32 %v28, 7
    %v30 = vsub.s32 0, %v29
    %v31 = vrot.slane %v26, %v30
    %v32 = vlaneseq
    %v33 = vshrl.u32 %v32, 7
    %v34 = vsub.s32 1, %v33
    %v35 = vrot.slane %v26, %v34
    %vm38 = vcmask 130048
    %v40 = vsel %vm38, %v21, 0
    %42 = vmatprep.subr.mxu0 %v23
    %43 = vmatpush1.msra.mxu0 %v22
    %44 = vmatprep.subr.mxu0 %v25
    %45 = vmatpush1.msra.mxu0 %v24
    %46 = vmatprep.subr.mxu0 0.0
    %47 = vmatpush1.msra.mxu0 0.0
    %48 = vmatprep.subr.mxu0 0.0
    %49 = vmatpush1.msra.mxu0 0.0
    %50 = vmatprep.subr.mxu0 0.0
    %51 = vmatpush1.msra.mxu0 0.0
    %52 = vmatprep.subr.mxu0 0.0
    %53 = vmatpush1.msra.mxu0 0.0
    %54 = vmatprep.subr.mxu0 0.0
    %55 = vmatpush1.msra.mxu0 0.0
    %56 = vmatprep.subr.mxu0 0.0
    %57 = vmatpush1.msra.mxu0 0.0
    %58 = vmatprep.subr.mxu0 0.0
    %59 = vmatpush1.msra.mxu0 0.0
    %60 = vmatprep.subr.mxu0 0.0
    %61 = vmatpush1.msra.mxu0 0.0
    %62 = vmatprep.subr.mxu0 0.0
    %63 = vmatpush1.msra.mxu0 0.0
    %64 = vmatprep.subr.mxu0 0.0
    %65 = vmatpush1.msra.mxu0 0.0
    %66 = vmatprep.subr.mxu0 0.0
    %67 = vmatpush1.msra.mxu0 0.0
    %68 = vmatprep.subr.mxu0 0.0
    %69 = vmatpush1.msra.mxu0 0.0
    %70 = vmatprep.subr.mxu0 0.0
    %71 = vmatpush1.msra.mxu0 0.0
    %72 = vmatprep.subr.mxu0 0.0
    %73 = vmatpush1.msra.mxu0 0.0
    %74 = vmatprep.subr.mxu0 0.0
    %75 = vmatpush1.msra.mxu0 0.0
    %76 = vmatprep.subr.mxu0 0.0
    %77 = vmatpush1.msra.mxu0 0.0
    %78 = vmatprep.subr.mxu0 0.0
    %79 = vmatpush1.msra.mxu0 0.0
    %80 = vmatprep.subr.mxu0 0.0
    %81 = vmatpush1.msra.mxu0 0.0
    %82 = vmatprep.subr.mxu0 0.0
    %83 = vmatpush1.msra.mxu0 0.0
    %84 = vmatprep.subr.mxu0 0.0
    %85 = vmatpush1.msra.mxu0 0.0
    %86 = vmatprep.subr.mxu0 0.0
    %87 = vmatpush1.msra.mxu0 0.0
    %88 = vmatprep.subr.mxu0 0.0
    %89 = vmatpush1.msra.mxu0 0.0
    %90 = vmatprep.subr.mxu0 0.0
    %91 = vmatpush1.msra.mxu0 0.0
    %92 = vmatprep.subr.mxu0 0.0
    %93 = vmatpush1.msra.mxu0 0.0
    %94 = vmatprep.subr.mxu0 0.0
    %95 = vmatpush1.msra.mxu0 0.0
    %96 = vmatprep.subr.mxu0 0.0
    %97 = vmatpush1.msra.mxu0 0.0
    %98 = vmatprep.subr.mxu0 0.0
    %99 = vmatpush1.msra.mxu0 0.0
    %100 = vmatprep.subr.mxu0 0.0
    %101 = vmatpush1.msra.mxu0 0.0
    %102 = vmatprep.subr.mxu0 0.0
    %103 = vmatpush1.msra.mxu0 0.0
    %104 = vmatprep.subr.mxu0 0.0
    %105 = vmatpush1.msra.mxu0 0.0
    %106 = vmatprep.mubr.f32.mxu0 0.0
    %107 = vmatmul.mubr.f32.gmra.mrb[0].mxu0 %v40
    %v108 = vpop.f32.mrb[0].mxu0
    %v109 = vadd.f32 %v31, %v108
    %v110 = vpop.f32.mrb[0].mxu0
    %v111 = vadd.f32 %v35, %v110
    %112 = vdwg.mxu0
    %v113 = vmax.f32 %v109, 0.0
    %v114 = vmax.f32 %v111, 0.0
    %v115 = vld [vmem:[%s3] sm:$0xff]
    %v116 = vld [vmem:[%s3 + $0x8] sm:$0xff]
    %v117 = vld [vmem:[%s3 + $0x10] sm:$0xff]
    %v118 = vld [vmem:[%s3 + $0x18] sm:$0xff]
    %v119 = vld [vmem:[%s3 + $0x20] sm:$0xff]
    %v120 = vld [vmem:[%s3 + $0x28] sm:$0xff]
    %v121 = vld [vmem:[%s3 + $0x30] sm:$0xff]
    %v122 = vld [vmem:[%s3 + $0x38] sm:$0xff]
    %v123 = vld [vmem:[%s3 + $0x40] sm:$0xff]
    %v124 = vld [vmem:[%s3 + $0x48] sm:$0xff]
    %v125 = vld [vmem:[%s3 + $0x50] sm:$0xff]
    %v126 = vld [vmem:[%s3 + $0x58] sm:$0xff]
    %v127 = vld [vmem:[%s3 + $0x60] sm:$0xff]
    %v128 = vld [vmem:[%s3 + $0x68] sm:$0xff]
    %v129 = vld [vmem:[%s3 + $0x70] sm:$0xff]
    %v130 = vld [vmem:[%s3 + $0x78] sm:$0xff]
    %v131 = vld [vmem:[%s3 + $0x80] sm:$0xff]
    %v132 = vld [vmem:[%s3 + $0x88] sm:$0xff]
    %v133 = vld [vmem:[%s3 + $0x90] sm:$0xff]
    %v134 = vld [vmem:[%s3 + $0x98] sm:$0xff]
    %v135 = vld [vmem:[%s3 + $0xa0] sm:$0xff]
    %v136 = vld [vmem:[%s3 + $0xa8] sm:$0xff]
    %v137 = vld [vmem:[%s3 + $0xb0] sm:$0xff]
    %v138 = vld [vmem:[%s3 + $0xb8] sm:$0xff]
    %v139 = vld [vmem:[%s3 + $0xc0] sm:$0xff]
    %v140 = vld [vmem:[%s3 + $0xc8] sm:$0xff]
    %v141 = vld [vmem:[%s3 + $0xd0] sm:$0xff]
    %v142 = vld [vmem:[%s3 + $0xd8] sm:$0xff]
    %v143 = vld [vmem:[%s3 + $0xe0] sm:$0xff]
    %v144 = vld [vmem:[%s3 + $0xe8] sm:$0xff]
    %v145 = vld [vmem:[%s3 + $0xf0] sm:$0xff]
    %v146 = vld [vmem:[%s3 + $0xf8] sm:$0xff]
    %v147 = vld [vmem:[%s4] sm:$0x1]
    %v149 = vlaneseq
    %v150 = vshrl.u32 %v149, 7
    %v151 = vsub.s32 0, %v150
    %v152 = vrot.slane %v147, %v151
    %154 = vmatprep.subr.mxu0 0.0
    %155 = vmatpush1.msra.mxu0 %v115
    %156 = vmatprep.subr.mxu0 0.0
    %157 = vmatpush1.msra.mxu0 %v116
    %158 = vmatprep.subr.mxu0 0.0
    %159 = vmatpush1.msra.mxu0 %v117
    %160 = vmatprep.subr.mxu0 0.0
    %161 = vmatpush1.msra.mxu0 %v118
    %162 = vmatprep.subr.mxu0 0.0
    %163 = vmatpush1.msra.mxu0 %v119
    %164 = vmatprep.subr.mxu0 0.0
    %165 = vmatpush1.msra.mxu0 %v120
    %166 = vmatprep.subr.mxu0 0.0
    %167 = vmatpush1.msra.mxu0 %v121
    %168 = vmatprep.subr.mxu0 0.0
    %169 = vmatpush1.msra.mxu0 %v122
    %170 = vmatprep.subr.mxu0 0.0
    %171 = vmatpush1.msra.mxu0 %v123
    %172 = vmatprep.subr.mxu0 0.0
    %173 = vmatpush1.msra.mxu0 %v124
    %174 = vmatprep.subr.mxu0 0.0
    %175 = vmatpush1.msra.mxu0 %v125
    %176 = vmatprep.subr.mxu0 0.0
    %177 = vmatpush1.msra.mxu0 %v126
    %178 = vmatprep.subr.mxu0 0.0
    %179 = vmatpush1.msra.mxu0 %v127
    %180 = vmatprep.subr.mxu0 0.0
    %181 = vmatpush1.msra.mxu0 %v128
    %182 = vmatprep.subr.mxu0 0.0
    %183 = vmatpush1.msra.mxu0 %v129
    %184 = vmatprep.subr.mxu0 0.0
    %185 = vmatpush1.msra.mxu0 %v130
    %186 = vmatprep.subr.mxu0 0.0
    %187 = vmatpush1.msra.mxu0 %v131
    %188 = vmatprep.subr.mxu0 0.0
    %189 = vmatpush1.msra.mxu0 %v132
    %190 = vmatprep.subr.mxu0 0.0
    %191 = vmatpush1.msra.mxu0 %v133
    %192 = vmatprep.subr.mxu0 0.0
    %193 = vmatpush1.msra.mxu0 %v134
    %194 = vmatprep.subr.mxu0 0.0
    %195 = vmatpush1.msra.mxu0 %v135
    %196 = vmatprep.subr.mxu0 0.0
    %197 = vmatpush1.msra.mxu0 %v136
    %198 = vmatprep.subr.mxu0 0.0
    %199 = vmatpush1.msra.mxu0 %v137
    %200 = vmatprep.subr.mxu0 0.0
    %201 = vmatpush1.msra.mxu0 %v138
    %202 = vmatprep.subr.mxu0 0.0
    %203 = vmatpush1.msra.mxu0 %v139
    %204 = vmatprep.subr.mxu0 0.0
    %205 = vmatpush1.msra.mxu0 %v140
    %206 = vmatprep.subr.mxu0 0.0
    %207 = vmatpush1.msra.mxu0 %v141
    %208 = vmatprep.subr.mxu0 0.0
    %209 = vmatpush1.msra.mxu0 %v142
    %210 = vmatprep.subr.mxu0 0.0
    %211 = vmatpush1.msra.mxu0 %v143
    %212 = vmatprep.subr.mxu0 0.0
    %213 = vmatpush1.msra.mxu0 %v144
    %214 = vmatprep.subr.mxu0 0.0
    %215 = vmatpush1.msra.mxu0 %v145
    %216 = vmatprep.subr.mxu0 0.0
    %217 = vmatpush1.msra.mxu0 %v146
    %218 = vmatprep.mubr.f32.mxu0 %v114
    %219 = vmatmul.mubr.f32.gmra.mrb[0].mxu0 %v113
    %v220 = vpop.f32.mrb[0].mxu0
    %v221 = vadd.f32 %v152, %v220
    %v222 = vpop.f32.mrb[0].mxu0
    %223 = vdwg.mxu0
    %vm224 = vcmask 64512
    %225 = vst.msk [vmem:[#allocation2] sm:$0xff] %vm224, %v221
    // Predicated region
    $region22: #{mlpd_forward.1} parent=1 // pred_check
      _
    $region23: #{mlpd_forward.1} parent=1 // pred_check_branch
      %227 = sbr.rel (0) target = $region25
    $region24: #{mlpd_forward.1} parent=1 // pred_region
      %s229 = ssub.s32 128, 128
      %230 = vsyncadd [#allocation3], %s229
      %s232 = sshll.u32 [#allocation2], 4
      %s233 = int_to_ptr.vmem [resolvable:$true] %s232
      %235 = dma.vmem_to_hbm [thread:$0]  %s233, 128, %s5, [#allocation3]
    $region25: #{mlpd_forward.1} parent=1 // pred_fallthru
      _
    // Predicated region
    $region26: #{mlpd_forward.1} parent=1 // pred_check
      _
    $region27: #{mlpd_forward.1} parent=1 // pred_check_branch
      %237 = sbr.rel (0) target = $region29
    $region28: #{mlpd_forward.1} parent=1 // pred_region
      %238 = dma.done [#allocation3], 128
    $region29: #{mlpd_forward.1} parent=1 // pred_fallthru
      _
    %239 = vsyncpa [#allocation3], 1

</llo_original>
